<compile_context>
chip_gen: v7x
topology: tpu7x:2x2x1
jax: 0.10.0
libtpu: 0.0.40
codegen_flags: <defaults>
</compile_context>

<pallas_src>
import functools

import jax
import jax.numpy as jnp
from jax.experimental import pallas as pl
from jax.experimental.pallas import tpu as pltpu


def _round_up(x: int, m: int) -> int:
    return ((x + m - 1) // m) * m


def _is_big_vmem_tpu() -> bool:
    """True for 128-MiB-VMEM generations (v4/v5e/v6e); False for v7x/unknown."""
    try:
        kind = jax.devices()[0].device_kind.lower()
    except Exception:
        return False
    return ("v4" in kind) or ("v5" in kind) or ("v6" in kind)


# --------------------------------------------------------------------------
# Kernels
# --------------------------------------------------------------------------
def _linear_single_block_kernel(x_ref, w_ref, b_ref, o_ref):
    # Whole problem in one VMEM block: one MXU matmul + broadcast bias add.
    o_ref[...] = (
        jnp.dot(x_ref[...], w_ref[...], preferred_element_type=jnp.float32)
        + b_ref[...]
    ).astype(o_ref.dtype)


def _linear_tiled_kernel(x_ref, w_ref, b_ref, o_ref):
    # Output BlockSpec ignores k -> the (tm, tn) f32 output tile stays VMEM
    # resident across the K axis; accumulate directly into it (no scratch).
    k = pl.program_id(2)
    part = jnp.dot(x_ref[...], w_ref[...], preferred_element_type=jnp.float32)

    @pl.when(k == 0)
    def _first():
        # No zero-fill pass; bias added exactly once per output tile.
        o_ref[...] = part + b_ref[...]

    @pl.when(k != 0)
    def _rest():
        o_ref[...] += part


# --------------------------------------------------------------------------
# Wrapper
# --------------------------------------------------------------------------
@functools.partial(jax.jit, static_argnames=("use_bf16",))
def my_linear(x, weight, bias, *, use_bf16: bool = False):
    """y = x @ weight + bias, matching myLinearFunction.forward."""
    M, K = x.shape
    K2, N = weight.shape
    assert K == K2 and bias.shape == (N,)
    orig_dtype = x.dtype

    bias2d = bias.reshape(1, N).astype(jnp.float32)
    if use_bf16:
        x = x.astype(jnp.bfloat16)
        weight = weight.astype(jnp.bfloat16)
    in_bytes = 2 if use_bf16 else 4

    # ---- single-block fast path (e.g. the shipped 8x32x32 case) ----------
    if M <= 512 and N <= 512 and K <= 512:
        cost = pl.CostEstimate(
            flops=2 * M * N * K,
            bytes_accessed=(M * K + K * N) * in_bytes + (M * N + N) * 4,
            transcendentals=0,
        )
        out = pl.pallas_call(
            _linear_single_block_kernel,
            out_shape=jax.ShapeDtypeStruct((M, N), jnp.float32),
            in_specs=[
                pl.BlockSpec(memory_space=pltpu.MemorySpace.VMEM),
                pl.BlockSpec(memory_space=pltpu.MemorySpace.VMEM),
                pl.BlockSpec(memory_space=pltpu.MemorySpace.VMEM),
            ],
            out_specs=pl.BlockSpec(memory_space=pltpu.MemorySpace.VMEM),
            cost_estimate=cost,
        )(x, weight, bias2d)
        return out.astype(orig_dtype)

    # ---- tiled path -------------------------------------------------------
    big_vmem = _is_big_vmem_tpu()
    sub = 16 if use_bf16 else 8                 # bf16 packs 2 rows / sublane
    tm = min(512, _round_up(M, sub))
    tn = min(1024 if big_vmem else 512, _round_up(N, 128))
    tk = min(512, _round_up(K, 128))

    # v7x has 2 TensorCores: make sure a "parallel" axis has >= 2 blocks.
    if not big_vmem:
        if pl.cdiv(M, tm) == 1 and pl.cdiv(N, tn) == 1 and N > 128:
            tn = _round_up(pl.cdiv(N, 2), 128)

    M_pad = _round_up(M, tm)
    N_pad = _round_up(N, tn)
    K_pad = _round_up(K, tk)

    # Zero-pad only when needed (zeros contribute nothing to the dot).
    if (M_pad, K_pad) != (M, K):
        x = jnp.pad(x, ((0, M_pad - M), (0, K_pad - K)))
    if (K_pad, N_pad) != (K, N):
        weight = jnp.pad(weight, ((0, K_pad - K), (0, N_pad - N)))
    if N_pad != N:
        bias2d = jnp.pad(bias2d, ((0, 0), (0, N_pad - N)))

    grid = (M_pad // tm, N_pad // tn, K_pad // tk)
    gm, gn = grid[0], grid[1]

    cost = pl.CostEstimate(
        flops=2 * M * N * K,
        # x re-streamed once per N-block, weight once per M-block.
        bytes_accessed=(gn * M * K + gm * K * N) * in_bytes + (M * N + N) * 4,
        transcendentals=0,
    )

    out = pl.pallas_call(
        _linear_tiled_kernel,
        out_shape=jax.ShapeDtypeStruct((M_pad, N_pad), jnp.float32),
        grid_spec=pltpu.PrefetchScalarGridSpec(
            num_scalar_prefetch=0,
            grid=grid,
            in_specs=[
                pl.BlockSpec((tm, tk), lambda i, j, k: (i, k)),
                pl.BlockSpec((tk, tn), lambda i, j, k: (k, j)),
                pl.BlockSpec((1, tn), lambda i, j, k: (0, j)),
            ],
            out_specs=pl.BlockSpec((tm, tn), lambda i, j, k: (i, j)),
        ),
        compiler_params=pltpu.CompilerParams(
            dimension_semantics=("parallel", "parallel", "arbitrary"),
            vmem_limit_bytes=(96 << 20) if big_vmem else (32 << 20),
        ),
        cost_estimate=cost,
    )(x, weight, bias2d)

    if (M_pad, N_pad) != (M, N):
        out = out[:M, :N]
    return out.astype(orig_dtype)


# --------------------------------------------------------------------------
# Self-test
# --------------------------------------------------------------------------
if __name__ == "__main__":
    key = jax.random.PRNGKey(0)
    kx, kw, kb, kx2, kw2, kb2 = jax.random.split(key, 6)

    # Spec shape: myLinear(input_features=32, output_features=32), batch=8.
    batch, in_features, out_features = 8, 32, 32
    x = jax.random.normal(kx, (batch, in_features), dtype=jnp.float32)
    w = jax.random.normal(kw, (in_features, out_features), dtype=jnp.float32)
    b = jax.random.normal(kb, (out_features,), dtype=jnp.float32)

    out = jax.block_until_ready(my_linear(x, w, b))          # fast path
    ref = x @ w + b[None, :]
    assert out.shape == ref.shape, "shape mismatch vs reference"
    assert jnp.allclose(out, ref, atol=1e-4, rtol=1e-5), "fast-path mismatch"

    # Larger shape that exercises the tiled multi-K-step path (with padding).
    M, K, N = 256, 1536, 640
    x2 = jax.random.normal(kx2, (M, K), dtype=jnp.float32)
    w2 = jax.random.normal(kw2, (K, N), dtype=jnp.float32)
    b2 = jax.random.normal(kb2, (N,), dtype=jnp.float32)
    out2 = jax.block_until_ready(my_linear(x2, w2, b2))
    ref2 = x2 @ w2 + b2[None, :]
    assert out2.shape == ref2.shape, "tiled shape mismatch"
    assert jnp.allclose(out2, ref2, atol=1e-2, rtol=1e-3), "tiled-path mismatch"

    # Optional bf16 MXU path (intentionally looser numerics, f32 accumulate).
    out_bf16 = jax.block_until_ready(my_linear(x, w, b, use_bf16=True))
    assert jnp.allclose(out_bf16, ref, atol=3e-1, rtol=5e-2), "bf16-path mismatch"

    print("KERNEL_OK")
</pallas_src>

<mosaic_0001>
module attributes {stable_mosaic.version = 11 : i64} {
  func.func @_linear_single_block_kernel(%arg0: memref<8x32xf32, #tpu.memory_space<vmem>>, %arg1: memref<32x32xf32, #tpu.memory_space<vmem>>, %arg2: memref<1x32xf32, #tpu.memory_space<vmem>>, %arg3: memref<8x32xf32, #tpu.memory_space<vmem>>) attributes {dimension_semantics = [], scalar_prefetch = 0 : i64, scratch_operands = 0 : i64, tpu.core_type = #tpu.core_type<tc>} {
    %c0 = arith.constant 0 : index
    %c0_0 = arith.constant 0 : index
    %0 = vector.load %arg0[%c0, %c0_0] : memref<8x32xf32, #tpu.memory_space<vmem>>, vector<8x32xf32>
    %c0_1 = arith.constant 0 : index
    %c0_2 = arith.constant 0 : index
    %1 = vector.load %arg1[%c0_1, %c0_2] : memref<32x32xf32, #tpu.memory_space<vmem>>, vector<32x32xf32>
    %cst = arith.constant dense<0.000000e+00> : vector<8x32xf32>
    %2 = tpu.matmul %0, %1, %cst {dimension_numbers = #tpu.dot_dimension_numbers<[1], [0], [0], [1], [0, 0, 1, 1], [], []>} : vector<8x32xf32>, vector<32x32xf32>, vector<8x32xf32> -> vector<8x32xf32>
    %c0_3 = arith.constant 0 : index
    %c0_4 = arith.constant 0 : index
    %3 = vector.load %arg2[%c0_3, %c0_4] : memref<1x32xf32, #tpu.memory_space<vmem>>, vector<1x32xf32>
    %4 = vector.broadcast %3 : vector<1x32xf32> to vector<8x32xf32>
    %5 = arith.addf %2, %4 : vector<8x32xf32>
    %c0_5 = arith.constant 0 : index
    %c0_6 = arith.constant 0 : index
    %6 = vector.load %arg3[%c0_5, %c0_6] : memref<8x32xf32, #tpu.memory_space<vmem>>, vector<8x32xf32>
    tpu.vector_store %arg3[%c0_5, %c0_6], %5 {strides = array<i32>} : memref<8x32xf32, #tpu.memory_space<vmem>>, vector<8x32xf32>,
    return
  }
}

</mosaic_0001>

<llo_original>
// kernel: my_linear.1
$region0: #{my_linear.1}
  #allocation0 [shape = 'u32[]', space=smem, size = 0x4, offset = 0x4, fixed_abs, tag = 'smem constant byte address 0x4 - core index']
  #allocation1 [shape = 'u32[144,128]{1,0:T(1,128)}', space=vmem, size = 0x12000, scoped, tag = 'internal scratch']
  %s0 = inlined_call_operand.hbm [shape: f32[8,32], index: 0, kind: input, shape index: {}]
  %s1 = inlined_call_operand.hbm [shape: f32[32,32], index: 1, kind: input, shape index: {}]
  %s2 = inlined_call_operand.vmem [shape: f32[1,32], index: 2, kind: input, shape index: {}]
  %s3 = inlined_call_operand.hbm [shape: f32[8,32], index: 3, kind: output, shape index: {}]
  %s4 = sld [smem:[#allocation0]]
  $region30: #{my_linear.1} parent=0
    _
  %s6 = ssub.s32 1, %s4
  %s7 = scalar_select 0, %s6, %s4
  $region1: #{my_linear.1} parent=0
    #allocation2 [shape = 'u8[4096]{0}', space=vmem, size = 0x1000, scoped, tag = 'input window, operand 0, single buffered']
    #allocation3 [shape = 's32[1]{0}', space=sflag, size = 0x4, scoped, tag = 'scoped memory for my_linear.1']
    #allocation4 [shape = 's32[1]{0}', space=sflag, size = 0x4, scoped, tag = 'scoped memory for my_linear.1']
    #allocation5 [shape = 'u8[16384]{0}', space=vmem, size = 0x4000, scoped, tag = 'input window, operand 1, single buffered']
    #allocation6 [shape = 's32[1]{0}', space=sflag, size = 0x4, scoped, tag = 'scoped memory for my_linear.1']
    #allocation7 [shape = 'u8[4096]{0}', space=vmem, size = 0x1000, scoped, tag = 'output window, operand 0, single buffered']
    %8 = vsyncpa [#allocation3], 0
    %9 = vsyncpa [#allocation6], 0
    %10 = vsyncpa [#allocation4], 0
    // Predicated region
    $region2: #{my_linear.1} parent=1 // pred_check
      _
    $region3: #{my_linear.1} parent=1 // pred_check_branch
      %12 = sbr.rel (0) target = $region5
    $region4: #{my_linear.1} parent=1 // pred_region
      %s14 = ssub.s32 128, 128
      %15 = vsyncadd [#allocation3], %s14
      %s17 = sshll.u32 [#allocation2], 4
      %s18 = int_to_ptr.vmem [resolvable:$true] %s17
      %20 = dma.hbm_to_vmem [thread:$0]  %s0, 128, %s18, [#allocation3]
    $region5: #{my_linear.1} parent=1 // pred_fallthru
      _
    // Predicated region
    $region6: #{my_linear.1} parent=1 // pred_check
      _
    $region7: #{my_linear.1} parent=1 // pred_check_branch
      %22 = sbr.rel (0) target = $region9
    $region8: #{my_linear.1} parent=1 // pred_region
      %s24 = ssub.s32 512, 512
      %25 = vsyncadd [#allocation6], %s24
      %s26 = sshll.u32 [#allocation5], 4
      %s27 = int_to_ptr.vmem [resolvable:$true] %s26
      %32 = dma.hbm_to_vmem [thread:$0]  %s1, 512, %s27, [#allocation6], 128, 128, 8
    $region9: #{my_linear.1} parent=1 // pred_fallthru
      _
    // Predicated region
    $region10: #{my_linear.1} parent=1 // pred_check
      _
    $region11: #{my_linear.1} parent=1 // pred_check_branch
      %34 = sbr.rel (0) target = $region13
    $region12: #{my_linear.1} parent=1 // pred_region
      _
    $region13: #{my_linear.1} parent=1 // pred_fallthru
      _
    // Predicated region
    $region14: #{my_linear.1} parent=1 // pred_check
      _
    $region15: #{my_linear.1} parent=1 // pred_check_branch
      %36 = sbr.rel (0) target = $region17
    $region16: #{my_linear.1} parent=1 // pred_region
      %37 = dma.done [#allocation3], 128
    $region17: #{my_linear.1} parent=1 // pred_fallthru
      _
    // Predicated region
    $region18: #{my_linear.1} parent=1 // pred_check
      _
    $region19: #{my_linear.1} parent=1 // pred_check_branch
      %39 = sbr.rel (0) target = $region21
    $region20: #{my_linear.1} parent=1 // pred_region
      %40 = dma.done [#allocation6], 512
    $region21: #{my_linear.1} parent=1 // pred_fallthru
      _
    %v41 = vld [vmem:[#allocation2] sm:$0xff]
    %v42 = vld [vmem:[#allocation5] sm:$0xff]
    %v43 = vld [vmem:[#allocation5 + $0x8] sm:$0xff]
    %v44 = vld [vmem:[#allocation5 + $0x10] sm:$0xff]
    %v45 = vld [vmem:[#allocation5 + $0x18] sm:$0xff]
    %v46 = vld [vmem:[%s2] sm:$0x1]
    %v48 = vlaneseq
    %v49 = vshrl.u32 %v48, 7
    %v50 = vsub.s32 0, %v49
    %v51 = vrot.slane %v46, %v50
    %vm53 = vcmask 261120
    %v55 = vsel %vm53, %v41, 0
    %57 = vmatprep.subr.mxu0 0.0
    %58 = vmatpush1.msra.mxu0 %v42
    %59 = vmatprep.subr.mxu0 0.0
    %60 = vmatpush1.msra.mxu0 %v43
    %61 = vmatprep.subr.mxu0 0.0
    %62 = vmatpush1.msra.mxu0 %v44
    %63 = vmatprep.subr.mxu0 0.0
    %64 = vmatpush1.msra.mxu0 %v45
    %65 = vmatprep.subr.mxu0 0.0
    %66 = vmatpush1.msra.mxu0 0.0
    %67 = vmatprep.subr.mxu0 0.0
    %68 = vmatpush1.msra.mxu0 0.0
    %69 = vmatprep.subr.mxu0 0.0
    %70 = vmatpush1.msra.mxu0 0.0
    %71 = vmatprep.subr.mxu0 0.0
    %72 = vmatpush1.msra.mxu0 0.0
    %73 = vmatprep.subr.mxu0 0.0
    %74 = vmatpush1.msra.mxu0 0.0
    %75 = vmatprep.subr.mxu0 0.0
    %76 = vmatpush1.msra.mxu0 0.0
    %77 = vmatprep.subr.mxu0 0.0
    %78 = vmatpush1.msra.mxu0 0.0
    %79 = vmatprep.subr.mxu0 0.0
    %80 = vmatpush1.msra.mxu0 0.0
    %81 = vmatprep.subr.mxu0 0.0
    %82 = vmatpush1.msra.mxu0 0.0
    %83 = vmatprep.subr.mxu0 0.0
    %84 = vmatpush1.msra.mxu0 0.0
    %85 = vmatprep.subr.mxu0 0.0
    %86 = vmatpush1.msra.mxu0 0.0
    %87 = vmatprep.subr.mxu0 0.0
    %88 = vmatpush1.msra.mxu0 0.0
    %89 = vmatprep.subr.mxu0 0.0
    %90 = vmatpush1.msra.mxu0 0.0
    %91 = vmatprep.subr.mxu0 0.0
    %92 = vmatpush1.msra.mxu0 0.0
    %93 = vmatprep.subr.mxu0 0.0
    %94 = vmatpush1.msra.mxu0 0.0
    %95 = vmatprep.subr.mxu0 0.0
    %96 = vmatpush1.msra.mxu0 0.0
    %97 = vmatprep.subr.mxu0 0.0
    %98 = vmatpush1.msra.mxu0 0.0
    %99 = vmatprep.subr.mxu0 0.0
    %100 = vmatpush1.msra.mxu0 0.0
    %101 = vmatprep.subr.mxu0 0.0
    %102 = vmatpush1.msra.mxu0 0.0
    %103 = vmatprep.subr.mxu0 0.0
    %104 = vmatpush1.msra.mxu0 0.0
    %105 = vmatprep.subr.mxu0 0.0
    %106 = vmatpush1.msra.mxu0 0.0
    %107 = vmatprep.subr.mxu0 0.0
    %108 = vmatpush1.msra.mxu0 0.0
    %109 = vmatprep.subr.mxu0 0.0
    %110 = vmatpush1.msra.mxu0 0.0
    %111 = vmatprep.subr.mxu0 0.0
    %112 = vmatpush1.msra.mxu0 0.0
    %113 = vmatprep.subr.mxu0 0.0
    %114 = vmatpush1.msra.mxu0 0.0
    %115 = vmatprep.subr.mxu0 0.0
    %116 = vmatpush1.msra.mxu0 0.0
    %117 = vmatprep.subr.mxu0 0.0
    %118 = vmatpush1.msra.mxu0 0.0
    %119 = vmatprep.subr.mxu0 0.0
    %120 = vmatpush1.msra.mxu0 0.0
    %121 = vmatprep.mubr.f32.mxu0 0.0
    %122 = vmatmul.mubr.f32.gmra.mrb[0].mxu0 %v55
    %v123 = vpop.f32.mrb[0].mxu0
    %v124 = vadd.f32 %v51, %v123
    %v125 = vpop.f32.mrb[0].mxu0
    %126 = vdwg.mxu0
    %127 = vst.msk [vmem:[#allocation7] sm:$0xff] %vm53, %v124
    // Predicated region
    $region22: #{my_linear.1} parent=1 // pred_check
      _
    $region23: #{my_linear.1} parent=1 // pred_check_branch
      %129 = sbr.rel (0) target = $region25
    $region24: #{my_linear.1} parent=1 // pred_region
      %s131 = ssub.s32 128, 128
      %132 = vsyncadd [#allocation4], %s131
      %s134 = sshll.u32 [#allocation7], 4
      %s135 = int_to_ptr.vmem [resolvable:$true] %s134
      %137 = dma.vmem_to_hbm [thread:$0]  %s135, 128, %s3, [#allocation4]
    $region25: #{my_linear.1} parent=1 // pred_fallthru
      _
    // Predicated region
    $region26: #{my_linear.1} parent=1 // pred_check
      _
    $region27: #{my_linear.1} parent=1 // pred_check_branch
      %139 = sbr.rel (0) target = $region29
    $region28: #{my_linear.1} parent=1 // pred_region
      %140 = dma.done [#allocation4], 128
    $region29: #{my_linear.1} parent=1 // pred_fallthru
      _
    %141 = vsyncpa [#allocation3], 1
    %142 = vsyncpa [#allocation6], 1
    %143 = vsyncpa [#allocation4], 1

</llo_original>
